<compile_context>
chip_gen: v5e
topology: v5e:2x2
jax: 0.10.0
libtpu: 0.0.40
codegen_flags: <defaults>
</compile_context>

<pallas_src>
import functools
import math

import jax
import jax.numpy as jnp
from jax.experimental import pallas as pl
from jax.experimental.pallas import tpu as pltpu


def _round_up(x: int, m: int) -> int:
    return ((x + m - 1) // m) * m


def _pick_tile(total: int, cap: int, mult: int = 1) -> int:
    """Largest divisor of `total` that is <= cap and (multiple of `mult` or == total)."""
    cap = max(1, min(cap, total))
    for d in range(cap, 0, -1):
        if total % d == 0 and (d % mult == 0 or d == total):
            return d
    return total


def _rel_pos_kernel(table_ref, out_ref, strip_ref, *,
                    max_rel_pos: int, tile_q: int, tile_k: int):
    """Computes one (tile_q, tile_k, dim) tile of the output.

    table_ref : VMEM ref, (vocab_pad, dim) zero-padded embedding table
    out_ref   : VMEM ref, (tile_q, tile_k, dim) output block
    strip_ref : VMEM scratch, (strip_pad, dim), strip_pad >= tile_q + tile_k - 1
    """
    qi = pl.program_id(0)
    ki = pl.program_id(1)
    strip_pad = strip_ref.shape[0]
    vocab_pad = table_ref.shape[0]

    # Relative position covered by strip slot s is r = base_lo + s, where
    # base_lo is the smallest (j - i) in this tile (row i = tile_q-1, col j = 0).
    base_lo = ki * tile_k - qi * tile_q - (tile_q - 1)

    # Clipped table-row index per strip slot (always inside the unpadded vocab).
    s_iota = jax.lax.broadcasted_iota(jnp.int32, (strip_pad, 1), 0)
    row_idx = jnp.clip(base_lo + s_iota, -max_rel_pos, max_rel_pos) + max_rel_pos

    # Tiny exact one-hot gather of the strip rows: (strip_pad, vocab_pad) only.
    col_iota = jax.lax.broadcasted_iota(jnp.int32, (1, vocab_pad), 1)
    onehot = (row_idx == col_iota).astype(table_ref.dtype)
    strip = jnp.dot(onehot, table_ref[...], preferred_element_type=jnp.float32)
    strip_ref[...] = strip.astype(strip_ref.dtype)

    # Toeplitz structure: out[i, j, :] = strip[(tile_q - 1 - i) + j, :].
    def copy_row(i, carry):
        off = tile_q - 1 - i
        out_ref[i] = strip_ref[pl.ds(off, tile_k), :]
        return carry

    jax.lax.fori_loop(0, tile_q, copy_row, 0)


def relative_positional_encoding(rel_pos_embeddings: jax.Array,
                                 length_q: int,
                                 length_k: int | None = None,
                                 *,
                                 tile_q: int | None = None,
                                 tile_k: int | None = None) -> jax.Array:
    """Pallas equivalent of RelativePositionalEncoding.forward.

    rel_pos_embeddings : (2*max_rel_pos + 1, dim) float table
    returns            : (length_q, length_k, dim)
    """
    if length_k is None:
        length_k = length_q
    vocab, dim = rel_pos_embeddings.shape
    max_rel_pos = (vocab - 1) // 2
    dtype = rel_pos_embeddings.dtype
    itemsize = jnp.dtype(dtype).itemsize

    # VMEM-aware tile defaults: ~4 MiB (lane-padded) per output buffer, so the
    # double-buffered output pipeline fits the scoped VMEM budget of every
    # generation (v5e 16 MiB, v6e/v7x 32 MiB default scoped limits).
    dim_pad = _round_up(dim, 128)
    max_rows = max(1, (4 * 1024 * 1024) // (dim_pad * itemsize))  # tile_q*tile_k budget
    if tile_k is None:
        tile_k = _pick_tile(length_k, min(512, max_rows), mult=8)
    if tile_q is None:
        tile_q = _pick_tile(length_q, max(1, max_rows // tile_k), mult=1)
    assert length_q % tile_q == 0, "tile_q must divide length_q"
    assert length_k % tile_k == 0, "tile_k must divide length_k"

    # Zero-pad table rows to a multiple of 128 (aligned gather operands);
    # padded rows are never selected since indices are clipped to [0, vocab).
    vocab_pad = _round_up(vocab, 128)
    table = rel_pos_embeddings
    if vocab_pad != vocab:
        table = jnp.pad(rel_pos_embeddings, ((0, vocab_pad - vocab), (0, 0)))

    strip_pad = _round_up(tile_q + tile_k - 1, 8)

    kernel = functools.partial(_rel_pos_kernel, max_rel_pos=max_rel_pos,
                               tile_q=tile_q, tile_k=tile_k)

    grid = (length_q // tile_q, length_k // tile_k)

    return pl.pallas_call(
        kernel,
        out_shape=jax.ShapeDtypeStruct((length_q, length_k, dim), dtype),
        grid_spec=pltpu.PrefetchScalarGridSpec(
            num_scalar_prefetch=0,
            grid=grid,
            in_specs=[
                # Small padded embedding table, fully resident every step.
                pl.BlockSpec((vocab_pad, dim), lambda i, k: (0, 0)),
            ],
            out_specs=pl.BlockSpec((tile_q, tile_k, dim),
                                   lambda i, k: (i, k, 0)),
            scratch_shapes=[pltpu.VMEM((strip_pad, dim), dtype)],
        ),
        compiler_params=pltpu.CompilerParams(
            dimension_semantics=("parallel", "parallel"),
            vmem_limit_bytes=32 * 1024 * 1024,
        ),
    )(table)


def _xavier_uniform(key, shape, dtype=jnp.float32):
    """Matches torch.nn.init.xavier_uniform_ for a 2-D tensor (fan_out, fan_in)."""
    fan_out, fan_in = shape
    bound = math.sqrt(6.0 / (fan_in + fan_out))
    return jax.random.uniform(key, shape, dtype=dtype, minval=-bound, maxval=bound)


def _reference(table, length_q, length_k, max_rel_pos):
    rq = jnp.arange(length_q)
    rk = jnp.arange(length_k)
    dist = rk[None, :] - rq[:, None]
    idx = jnp.clip(dist, -max_rel_pos, max_rel_pos) + max_rel_pos
    return table[idx]


if __name__ == "__main__":
    # Small, deterministic configuration consistent with the module.
    dim = 32
    max_rel_pos = 4

    key = jax.random.PRNGKey(0)
    rel_pos_embeddings = _xavier_uniform(key, (2 * max_rel_pos + 1, dim))

    # Test 1: square case, single tile.
    length_q, length_k = 8, 8
    out = relative_positional_encoding(rel_pos_embeddings, length_q, length_k)
    out = jax.block_until_ready(out)
    ref = _reference(rel_pos_embeddings, length_q, length_k, max_rel_pos)
    assert out.shape == (length_q, length_k, dim)
    assert jnp.allclose(out, ref, atol=1e-5, rtol=1e-5), "mismatch vs reference (8x8)"

    # Test 2: rectangular case exercising a multi-tile 2-D grid (2 x 3 tiles).
    length_q, length_k = 16, 24
    out2 = relative_positional_encoding(rel_pos_embeddings, length_q, length_k,
                                        tile_q=8, tile_k=8)
    out2 = jax.block_until_ready(out2)
    ref2 = _reference(rel_pos_embeddings, length_q, length_k, max_rel_pos)
    assert out2.shape == (length_q, length_k, dim)
    assert jnp.allclose(out2, ref2, atol=1e-5, rtol=1e-5), "mismatch vs reference (16x24)"

    print("KERNEL_OK")
</pallas_src>

<mosaic_0001>
module attributes {stable_mosaic.version = 11 : i64} {
  func.func @_rel_pos_kernel(%arg0: i32, %arg1: i32, %arg2: memref<128x32xf32, #tpu.memory_space<vmem>>, %arg3: memref<8x8x32xf32, #tpu.memory_space<vmem>>, %arg4: memref<16x32xf32, #tpu.memory_space<vmem>>) attributes {dimension_semantics = [#tpu.dimension_semantics<parallel>, #tpu.dimension_semantics<parallel>], iteration_bounds = array<i64: 1, 1>, scalar_prefetch = 0 : i64, scratch_operands = 1 : i64, tpu.core_type = #tpu.core_type<tc>, window_params = [{pipeline_mode = #tpu.pipeline_mode<synchronous>, transform_indices = @transform_0, window_bounds = array<i64: 128, 32>}, {transform_indices = @transform_1, window_bounds = array<i64: 8, 8, 32>}]} {
    %c8_i32 = arith.constant 8 : i32
    %0 = arith.muli %arg1, %c8_i32 : i32
    %c8_i32_0 = arith.constant 8 : i32
    %1 = arith.muli %arg0, %c8_i32_0 : i32
    %2 = arith.subi %0, %1 : i32
    %c7_i32 = arith.constant 7 : i32
    %3 = arith.subi %2, %c7_i32 : i32
    %4 = tpu.iota {dimensions = array<i32: 0>} : vector<16x1xi32>
    %5 = vector.broadcast %3 : i32 to vector<16x1xi32>
    %6 = arith.addi %5, %4 : vector<16x1xi32>
    %c-4_i32 = arith.constant -4 : i32
    %c4_i32 = arith.constant 4 : i32
    %7 = vector.broadcast %c-4_i32 : i32 to vector<16x1xi32>
    %8 = arith.maxsi %7, %6 : vector<16x1xi32>
    %9 = vector.broadcast %c4_i32 : i32 to vector<16x1xi32>
    %10 = arith.minsi %9, %8 : vector<16x1xi32>
    %c4_i32_1 = arith.constant 4 : i32
    %11 = vector.broadcast %c4_i32_1 : i32 to vector<16x1xi32>
    %12 = arith.addi %10, %11 : vector<16x1xi32>
    %13 = tpu.iota {dimensions = array<i32: 1>} : vector<1x128xi32>
    %14 = vector.broadcast %12 : vector<16x1xi32> to vector<16x128xi32>
    %15 = vector.broadcast %13 : vector<1x128xi32> to vector<16x128xi32>
    %16 = arith.cmpi eq, %14, %15 : vector<16x128xi32>
    %17 = arith.extui %16 : vector<16x128xi1> to vector<16x128xi32>
    %18 = arith.sitofp %17 : vector<16x128xi32> to vector<16x128xf32>
    %c0 = arith.constant 0 : index
    %c0_2 = arith.constant 0 : index
    %19 = vector.load %arg2[%c0, %c0_2] : memref<128x32xf32, #tpu.memory_space<vmem>>, vector<128x32xf32>
    %cst = arith.constant dense<0.000000e+00> : vector<16x32xf32>
    %20 = tpu.matmul %18, %19, %cst {dimension_numbers = #tpu.dot_dimension_numbers<[1], [0], [0], [1], [0, 0, 1, 1], [], []>} : vector<16x128xf32>, vector<128x32xf32>, vector<16x32xf32> -> vector<16x32xf32>
    %c0_3 = arith.constant 0 : index
    %c0_4 = arith.constant 0 : index
    %21 = vector.load %arg4[%c0_3, %c0_4] : memref<16x32xf32, #tpu.memory_space<vmem>>, vector<16x32xf32>
    tpu.vector_store %arg4[%c0_3, %c0_4], %20 {strides = array<i32>} : memref<16x32xf32, #tpu.memory_space<vmem>>, vector<16x32xf32>,
    %c0_i32 = arith.constant 0 : i32
    %c8_i32_5 = arith.constant 8 : i32
    %22 = arith.addi %c0_i32, %c8_i32_5 : i32
    %c1_i32 = arith.constant 1 : i32
    scf.for %arg5 = %c0_i32 to %22 step %c1_i32  : i32 {
      %c7_i32_7 = arith.constant 7 : i32
      %23 = arith.subi %c7_i32_7, %arg5 : i32
      %24 = arith.index_cast %23 : i32 to index
      %c0_8 = arith.constant 0 : index
      %25 = vector.load %arg4[%24, %c0_8] : memref<16x32xf32, #tpu.memory_space<vmem>>, vector<8x32xf32>
      %26 = arith.index_cast %arg5 : i32 to index
      %c0_9 = arith.constant 0 : index
      %c0_10 = arith.constant 0 : index
      %27 = vector.load %arg3[%26, %c0_9, %c0_10] : memref<8x8x32xf32, #tpu.memory_space<vmem>>, vector<1x8x32xf32>
      %28 = vector.shape_cast %27 : vector<1x8x32xf32> to vector<8x32xf32>
      %29 = vector.shape_cast %25 : vector<8x32xf32> to vector<1x8x32xf32>
      tpu.vector_store %arg3[%26, %c0_9, %c0_10], %29 {strides = array<i32>} : memref<8x8x32xf32, #tpu.memory_space<vmem>>, vector<1x8x32xf32>,
    }
    %c8_i32_6 = arith.constant 8 : i32
    return
  }
  func.func @transform_0(%arg0: i32, %arg1: i32) -> (i32, i32) {
    %c0_i32 = arith.constant 0 : i32
    %c0_i32_0 = arith.constant 0 : i32
    %c0_i32_1 = arith.constant 0 : i32
    return %c0_i32, %c0_i32_0 : i32, i32
  }
  func.func @transform_1(%arg0: i32, %arg1: i32) -> (i32, i32, i32) {
    %c0_i32 = arith.constant 0 : i32
    %c0_i32_0 = arith.constant 0 : i32
    return %arg0, %arg1, %c0_i32 : i32, i32, i32
  }
}

</mosaic_0001>

<llo_original>
// kernel: tpu_custom_call.1
$region0: #{tpu_custom_call.1}
  #allocation0 [shape = 'u32[]', space=smem, size = 0x4, offset = 0x4, fixed_abs, tag = 'smem constant byte address 0x4 - core index']
  #allocation1 [shape = 'u32[72,128]{1,0:T(1,128)}', space=vmem, size = 0x9000, scoped, tag = 'internal scratch']
  #allocation2 [shape = 'f32[16,32]{1,0:T(8,128)}', space=vmem, size = 0x2000, scoped, tag = 'scratch operand']
  %s0 = inlined_call_operand.vmem [shape: f32[128,32], index: 0, kind: input, shape index: {}]
  %s1 = inlined_call_operand.hbm [shape: f32[8,8,32], index: 1, kind: output, shape index: {}]
  %s2 = sld [smem:[#allocation0]]
  $region21: #{tpu_custom_call.1} parent=0
    _
  %s4 = ssub.s32 1, %s2
  %s5 = scalar_select 0, %s4, %s2
  $region1: #{tpu_custom_call.1} parent=0
    #allocation3 [shape = 'u8[32768]{0}', space=vmem, size = 0x8000, scoped, tag = 'output window, operand 0, single buffered']
    #allocation4 [shape = 's32[1]{0}', space=sflag, size = 0x4, scoped, tag = 'scoped memory for tpu_custom_call.1']
    %6 = vsyncpa [#allocation4], 0
    // Predicated region
    $region2: #{tpu_custom_call.1} parent=1 // pred_check
      _
    $region3: #{tpu_custom_call.1} parent=1 // pred_check_branch
      %8 = sbr.rel (0) target = $region5
    $region4: #{tpu_custom_call.1} parent=1 // pred_region
      _
    $region5: #{tpu_custom_call.1} parent=1 // pred_fallthru
      _
    %s9 = smul.u32 0, 8
    %s10 = smul.u32 0, 8
    %s11 = ssub.s32 %s9, %s10
    %s12 = ssub.s32 %s11, 7
    %v13 = vlaneseq
    %v14 = vshrl.u32 %v13, 7
    %v15 = vadd.s32 %v14, 8
    %v16 = vstv %s12
    %v17 = vadd.s32 %v16, %v14
    %v18 = vadd.s32 %v16, %v15
    %vm19 = vcmp.gt.s32.totalorder %v17, 4294967292
    %v20 = vsel %vm19, %v17, 4294967292
    %vm21 = vcmp.gt.s32.totalorder %v18, 4294967292
    %v22 = vsel %vm21, %v18, 4294967292
    %vm23 = vcmp.lt.s32.totalorder %v20, 4
    %v24 = vsel %vm23, %v20, 4
    %vm25 = vcmp.lt.s32.totalorder %v22, 4
    %v26 = vsel %vm25, %v22, 4
    %v27 = vadd.s32 %v24, 4
    %v28 = vadd.s32 %v26, 4
    %v29 = vlaneseq
    %v30 = vand.u32 %v29, 127
    %vm31 = vcmp.eq.s32.totalorder %v27, %v30
    %vm32 = vcmp.eq.s32.totalorder %v28, %v30
    %v33 = vsel %vm31, 1, 0
    %v34 = vsel %vm32, 1, 0
    %v35 = vcvt.s32.f32 %v33
    %v36 = vcvt.s32.f32 %v34
    %v37 = vld [vmem:[%s0] sm:$0xff]
    %v38 = vld [vmem:[%s0 + $0x8] sm:$0xff]
    %v39 = vld [vmem:[%s0 + $0x10] sm:$0xff]
    %v40 = vld [vmem:[%s0 + $0x18] sm:$0xff]
    %v41 = vld [vmem:[%s0 + $0x20] sm:$0xff]
    %v42 = vld [vmem:[%s0 + $0x28] sm:$0xff]
    %v43 = vld [vmem:[%s0 + $0x30] sm:$0xff]
    %v44 = vld [vmem:[%s0 + $0x38] sm:$0xff]
    %v45 = vld [vmem:[%s0 + $0x40] sm:$0xff]
    %v46 = vld [vmem:[%s0 + $0x48] sm:$0xff]
    %v47 = vld [vmem:[%s0 + $0x50] sm:$0xff]
    %v48 = vld [vmem:[%s0 + $0x58] sm:$0xff]
    %v49 = vld [vmem:[%s0 + $0x60] sm:$0xff]
    %v50 = vld [vmem:[%s0 + $0x68] sm:$0xff]
    %v51 = vld [vmem:[%s0 + $0x70] sm:$0xff]
    %v52 = vld [vmem:[%s0 + $0x78] sm:$0xff]
    %53 = vmatpush.msra.mxu0 %v52
    %54 = vmatpush.msra.mxu0 %v51
    %55 = vmatpush.msra.mxu0 %v50
    %56 = vmatpush.msra.mxu0 %v49
    %57 = vmatpush.msra.mxu0 %v48
    %58 = vmatpush.msra.mxu0 %v47
    %59 = vmatpush.msra.mxu0 %v46
    %60 = vmatpush.msra.mxu0 %v45
    %61 = vmatpush.msra.mxu0 %v44
    %62 = vmatpush.msra.mxu0 %v43
    %63 = vmatpush.msra.mxu0 %v42
    %64 = vmatpush.msra.mxu0 %v41
    %65 = vmatpush.msra.mxu0 %v40
    %66 = vmatpush.msra.mxu0 %v39
    %67 = vmatpush.msra.mxu0 %v38
    %68 = vmatpush.msra.mxu0 %v37
    %69 = vmatmul.f32.gmra.mxu0 %v35
    %v70 = vpop.f32.mrf.mxu0
    %v71 = vadd.f32 0.0, %v70
    %72 = vmatmul.f32.gmra.mxu0 %v36
    %v73 = vpop.f32.mrf.mxu0
    %v74 = vadd.f32 0.0, %v73
    %75 = vdwg.mxu0
    %vm76 = vcmask 261120
    %77 = vst.msk [vmem:[#allocation2] sm:$0xff] %vm76, %v71
    %78 = vst.msk [vmem:[#allocation2 + $0x8] sm:$0xff] %vm76, %v74
    loop: start=0, step=1, limit=8
    $region6: #{tpu_custom_call.1} parent=1 // loop_pre_header
      _
    $region7: #{tpu_custom_call.1} parent=1 // loop_header
      %s80 = sphi 0, %s84
      %p81 = scmp.ge.s32.totalorder %s80, 8
    $region8: #{tpu_custom_call.1} parent=1 // loop_header_branch
      %83 = sbr.rel (%p81) target = $region12
    $region9: #{tpu_custom_call.1} parent=1 // loop_body
      %s85 = ssub.s32 7, %s80
      %s86 = scalar_lea.vmem [#allocation2], %s85
      %v87 = vld [vmem:[%s86] sm:$0xff]
      %s88 = smul.u32 %s80, 8
      %s89 = scalar_lea.vmem [#allocation3], %s88
      %90 = vst.msk [vmem:[%s89] sm:$0xff] %vm76, %v87
    $region10: #{tpu_custom_call.1} parent=1 // loop_footer
      %s84 = sadd.s32 1, %s80
    $region11: #{tpu_custom_call.1} parent=1 // loop_footer_branch
      %79 = sbr.rel target = $region7
    $region12: #{tpu_custom_call.1} parent=1 // loop_exit
      _
    // Predicated region
    $region13: #{tpu_custom_call.1} parent=1 // pred_check
      _
    $region14: #{tpu_custom_call.1} parent=1 // pred_check_branch
      %92 = sbr.rel (0) target = $region16
    $region15: #{tpu_custom_call.1} parent=1 // pred_region
      %94 = vsyncadd [#allocation4], 0
      %s95 = sshll.u32 [#allocation3], 4
      %s96 = int_to_ptr.vmem [resolvable:$true] %s95
      %s97 = sshll.u32 %s1, 4
      %s98 = int_to_ptr.hbm [resolvable:$true] %s97
      %103 = dma.vmem_to_hbm [thread:$0]  %s96, 1024, %s98, [#allocation4], 128, 128, 8
    $region16: #{tpu_custom_call.1} parent=1 // pred_fallthru
      _
    // Predicated region
    $region17: #{tpu_custom_call.1} parent=1 // pred_check
      _
    $region18: #{tpu_custom_call.1} parent=1 // pred_check_branch
      %105 = sbr.rel (0) target = $region20
    $region19: #{tpu_custom_call.1} parent=1 // pred_region
      %107 = dma.done [#allocation4], 1024
    $region20: #{tpu_custom_call.1} parent=1 // pred_fallthru
      _
    %108 = vsyncpa [#allocation4], 1

</llo_original>
